<compile_context>
chip_gen: v7x
topology: tpu7x:2x2x1
jax: 0.10.0
libtpu: 0.0.40
codegen_flags: <defaults>
</compile_context>

<pallas_src>
import functools

import jax
import jax.numpy as jnp
from jax.experimental import pallas as pl
from jax.experimental.pallas import tpu as pltpu


def _round_up(x, m):
    return ((x + m - 1) // m) * m


def _focal_loss_kernel(logits_ref, target_ref, wt_ref, out_ref, *, alpha, gamma):
    x = logits_ref[...].astype(jnp.float32)      # (TILE_N, C)
    tgt = target_ref[...]                        # (TILE_N, 1) int32
    w_t = wt_ref[...]                            # (TILE_N, 1) f32  (pre-gathered weight[target])

    n, c = x.shape

    # log-sum-exp over classes (lane axis)
    m = jnp.max(x, axis=-1, keepdims=True)                               # (TILE_N, 1)
    lse = m + jnp.log(jnp.sum(jnp.exp(x - m), axis=-1, keepdims=True))   # (TILE_N, 1)

    # gather the target logit via select + cross-lane reduce (no f32 one-hot)
    col = jax.lax.broadcasted_iota(jnp.int32, (n, c), 1)                 # (TILE_N, C)
    x_t = jnp.sum(jnp.where(col == tgt, x, 0.0), axis=-1, keepdims=True)  # (TILE_N, 1)

    # weighted per-sample cross entropy (reduction='none')
    ce = w_t * (lse - x_t)                                               # (TILE_N, 1)

    # focal transform
    p = jnp.exp(-ce)
    one_minus_p = jnp.maximum(1.0 - p, 0.0)   # clamp: ce ~ 0 can round p slightly > 1
    if gamma == 0.0:
        mod = jnp.ones_like(p)
    elif float(gamma).is_integer() and 0 < gamma <= 4:
        mod = one_minus_p
        for _ in range(int(gamma) - 1):
            mod = mod * one_minus_p            # EUP-free path for common integer gammas
    else:
        mod = one_minus_p ** gamma
    out_ref[...] = (alpha * mod * ce).astype(out_ref.dtype)


def focal_loss_pallas(logits, target, weight=None, *, alpha=1.0, gamma=0.0,
                      reduction='none', tile_n=None):
    """FocalLoss forward.

    logits: (N, C) float (f32 or bf16; lse math is done in f32 inside the kernel)
    target: (N,) int
    weight: optional (C,) per-class weights
    """
    n, c = logits.shape

    # per-sample class weight gathered outside the kernel (cheap XLA gather)
    if weight is None:
        w_t = jnp.ones((n,), dtype=jnp.float32)
    else:
        w_t = weight.astype(jnp.float32)[target]
    w_t2d = w_t.reshape(n, 1)
    target2d = target.reshape(n, 1).astype(jnp.int32)

    # Tile size: largest multiple of 8 rows with the logits block capped at
    # ~8 MiB per buffer (x2 for double buffering) -> safe on v5e/v6e/v7x.
    if tile_n is None:
        bytes_per_row = c * jnp.dtype(logits.dtype).itemsize
        per_buffer_budget = 8 * 1024 * 1024
        tile_n = max(8, min(4096, (per_buffer_budget // max(bytes_per_row, 1)) // 8 * 8))
    tile_n = int(max(8, min(tile_n, _round_up(n, 8))))

    # pad N so the grid tiles the batch exactly (padded rows: w_t = 0 -> loss 0)
    n_pad = _round_up(n, tile_n)
    if n_pad != n:
        logits = jnp.pad(logits, ((0, n_pad - n), (0, 0)))
        target2d = jnp.pad(target2d, ((0, n_pad - n), (0, 0)))
        w_t2d = jnp.pad(w_t2d, ((0, n_pad - n), (0, 0)))

    kernel = functools.partial(_focal_loss_kernel, alpha=float(alpha), gamma=float(gamma))

    out = pl.pallas_call(
        kernel,
        out_shape=jax.ShapeDtypeStruct((n_pad, 1), jnp.float32),
        grid_spec=pltpu.PrefetchScalarGridSpec(
            num_scalar_prefetch=0,
            grid=(n_pad // tile_n,),
            in_specs=[
                pl.BlockSpec((tile_n, c), lambda i: (i, 0)),   # logits tile
                pl.BlockSpec((tile_n, 1), lambda i: (i, 0)),   # targets
                pl.BlockSpec((tile_n, 1), lambda i: (i, 0)),   # weight[target]
            ],
            out_specs=pl.BlockSpec((tile_n, 1), lambda i: (i, 0)),
        ),
        compiler_params=pltpu.CompilerParams(
            dimension_semantics=("parallel",),          # megacore sharding on v7x
            vmem_limit_bytes=48 * 1024 * 1024,          # fits every generation's VMEM
        ),
    )(logits, target2d, w_t2d)

    loss = out.reshape(n_pad)[:n]
    if reduction == 'none':
        return loss
    else:
        # PyTorch focal_loss: plain mean of the per-sample focal losses
        return jnp.mean(loss)

# TODO(synk): for very large C (LM-vocab scale), add a second "arbitrary" grid
# axis over C with an online logsumexp accumulator so the class row need not
# fit in one VMEM block.


def _focal_loss_ref(logits, target, weight=None, *, alpha=1.0, gamma=0.0):
    # pure-JAX reference for verification
    logp = jax.nn.log_softmax(logits.astype(jnp.float32), axis=-1)
    ce = -jnp.take_along_axis(logp, target[:, None], axis=-1)[:, 0]
    if weight is not None:
        ce = ce * weight.astype(jnp.float32)[target]
    p = jnp.exp(-ce)
    mod = jnp.ones_like(p) if gamma == 0 else jnp.maximum(1.0 - p, 0.0) ** gamma
    return alpha * mod * ce


if __name__ == "__main__":
    key = jax.random.PRNGKey(0)
    k1, k2, k3, k4, k5 = jax.random.split(key, 5)

    # --- test 1: module defaults (alpha=1, gamma=0, reduction='none'), single tile ---
    N, C = 64, 128
    logits = jax.random.normal(k1, (N, C), dtype=jnp.float32)
    target = jax.random.randint(k2, (N,), 0, C, dtype=jnp.int32)
    weight = jax.random.uniform(k3, (C,), dtype=jnp.float32, minval=0.5, maxval=1.5)

    out = focal_loss_pallas(logits, target, weight, alpha=1.0, gamma=0.0,
                            reduction='none')
    out = jax.block_until_ready(out)
    ref = _focal_loss_ref(logits, target, weight, alpha=1.0, gamma=0.0)
    assert out.shape == (N,)
    assert jnp.allclose(out, ref, atol=1e-5, rtol=1e-5), (out, ref)

    # --- test 2: multi-tile grid (N not a multiple of the tile), gamma=2 fast path ---
    N2 = 200
    logits2 = jax.random.normal(k4, (N2, C), dtype=jnp.float32)
    target2 = jax.random.randint(k5, (N2,), 0, C, dtype=jnp.int32)

    out2 = jax.block_until_ready(
        focal_loss_pallas(logits2, target2, weight, alpha=0.25, gamma=2.0,
                          reduction='none', tile_n=64))
    ref2 = _focal_loss_ref(logits2, target2, weight, alpha=0.25, gamma=2.0)
    assert out2.shape == (N2,)
    assert jnp.allclose(out2, ref2, atol=1e-5, rtol=1e-5), (out2, ref2)

    # --- test 3: mean reduction, no class weights, non-integer gamma ---
    out3 = jax.block_until_ready(
        focal_loss_pallas(logits2, target2, None, alpha=1.0, gamma=1.5,
                          reduction='mean', tile_n=64))
    ref3 = jnp.mean(_focal_loss_ref(logits2, target2, None, alpha=1.0, gamma=1.5))
    assert jnp.allclose(out3, ref3, atol=1e-5, rtol=1e-5), (out3, ref3)

    print("KERNEL_OK")
</pallas_src>

<mosaic_0001>
module attributes {stable_mosaic.version = 11 : i64} {
  func.func @_focal_loss_kernel(%arg0: i32, %arg1: memref<64x128xf32, #tpu.memory_space<vmem>>, %arg2: memref<64x1xi32, #tpu.memory_space<vmem>>, %arg3: memref<64x1xf32, #tpu.memory_space<vmem>>, %arg4: memref<64x1xf32, #tpu.memory_space<vmem>>) attributes {dimension_semantics = [#tpu.dimension_semantics<parallel>], iteration_bounds = array<i64: 1>, scalar_prefetch = 0 : i64, scratch_operands = 0 : i64, tpu.core_type = #tpu.core_type<tc>, window_params = [{transform_indices = @transform_0, window_bounds = array<i64: 64, 128>}, {transform_indices = @transform_1, window_bounds = array<i64: 64, 1>}, {transform_indices = @transform_2, window_bounds = array<i64: 64, 1>}, {transform_indices = @transform_3, window_bounds = array<i64: 64, 1>}]} {
    %c0 = arith.constant 0 : index
    %c0_0 = arith.constant 0 : index
    %0 = vector.load %arg1[%c0, %c0_0] : memref<64x128xf32, #tpu.memory_space<vmem>>, vector<64x128xf32>
    %c0_1 = arith.constant 0 : index
    %c0_2 = arith.constant 0 : index
    %1 = vector.load %arg2[%c0_1, %c0_2] : memref<64x1xi32, #tpu.memory_space<vmem>>, vector<64x1xi32>
    %c0_3 = arith.constant 0 : index
    %c0_4 = arith.constant 0 : index
    %2 = vector.load %arg3[%c0_3, %c0_4] : memref<64x1xf32, #tpu.memory_space<vmem>>, vector<64x1xf32>
    %cst = arith.constant dense<0xFF800000> : vector<64xf32>
    %3 = vector.multi_reduction <maximumf>, %0, %cst [1] : vector<64x128xf32> to vector<64xf32>
    %4 = vector.shape_cast %3 : vector<64xf32> to vector<64x1xf32>
    %5 = vector.broadcast %4 : vector<64x1xf32> to vector<64x128xf32>
    %6 = arith.subf %0, %5 : vector<64x128xf32>
    %7 = math.exp %6 : vector<64x128xf32>
    %cst_5 = arith.constant dense<0.000000e+00> : vector<64xf32>
    %8 = vector.multi_reduction <add>, %7, %cst_5 [1] : vector<64x128xf32> to vector<64xf32>
    %9 = vector.shape_cast %8 : vector<64xf32> to vector<64x1xf32>
    %10 = math.log %9 : vector<64x1xf32>
    %11 = arith.addf %4, %10 : vector<64x1xf32>
    %12 = tpu.iota {dimensions = array<i32: 1>} : vector<64x128xi32>
    %13 = vector.broadcast %1 : vector<64x1xi32> to vector<64x128xi32>
    %14 = arith.cmpi eq, %12, %13 : vector<64x128xi32>
    %cst_6 = arith.constant 0.000000e+00 : f32
    %15 = vector.broadcast %cst_6 : f32 to vector<64x128xf32>
    %16 = arith.select %14, %0, %15 : vector<64x128xi1>, vector<64x128xf32>
    %cst_7 = arith.constant dense<0.000000e+00> : vector<64xf32>
    %17 = vector.multi_reduction <add>, %16, %cst_7 [1] : vector<64x128xf32> to vector<64xf32>
    %18 = vector.shape_cast %17 : vector<64xf32> to vector<64x1xf32>
    %19 = arith.subf %11, %18 : vector<64x1xf32>
    %20 = arith.mulf %2, %19 : vector<64x1xf32>
    %cst_8 = arith.constant 1.000000e+00 : f32
    %21 = vector.broadcast %cst_8 : f32 to vector<64x1xf32>
    %cst_9 = arith.constant 1.000000e+00 : f32
    %22 = vector.broadcast %cst_9 : f32 to vector<64x1xf32>
    %23 = arith.mulf %22, %21 : vector<64x1xf32>
    %24 = arith.mulf %23, %20 : vector<64x1xf32>
    %c0_10 = arith.constant 0 : index
    %c0_11 = arith.constant 0 : index
    %25 = vector.load %arg4[%c0_10, %c0_11] : memref<64x1xf32, #tpu.memory_space<vmem>>, vector<64x1xf32>
    tpu.vector_store %arg4[%c0_10, %c0_11], %24 {strides = array<i32>} : memref<64x1xf32, #tpu.memory_space<vmem>>, vector<64x1xf32>,
    return
  }
  func.func @transform_0(%arg0: i32) -> (i32, i32) {
    %c0_i32 = arith.constant 0 : i32
    %c0_i32_0 = arith.constant 0 : i32
    return %arg0, %c0_i32 : i32, i32
  }
  func.func @transform_1(%arg0: i32) -> (i32, i32) {
    %c0_i32 = arith.constant 0 : i32
    %c0_i32_0 = arith.constant 0 : i32
    return %arg0, %c0_i32 : i32, i32
  }
  func.func @transform_2(%arg0: i32) -> (i32, i32) {
    %c0_i32 = arith.constant 0 : i32
    %c0_i32_0 = arith.constant 0 : i32
    return %arg0, %c0_i32 : i32, i32
  }
  func.func @transform_3(%arg0: i32) -> (i32, i32) {
    %c0_i32 = arith.constant 0 : i32
    %c0_i32_0 = arith.constant 0 : i32
    return %arg0, %c0_i32 : i32, i32
  }
}

</mosaic_0001>

<llo_original>
// kernel: tpu_custom_call.1
$region0: #{tpu_custom_call.1}
  #allocation0 [shape = 'u32[]', space=smem, size = 0x4, offset = 0x4, fixed_abs, tag = 'smem constant byte address 0x4 - core index']
  #allocation1 [shape = 'u32[144,128]{1,0:T(1,128)}', space=vmem, size = 0x12000, scoped, tag = 'internal scratch']
  %s0 = inlined_call_operand.vmem [shape: f32[64,128], index: 0, kind: input, shape index: {}]
  %s1 = inlined_call_operand.vmem [shape: s32[64,1], index: 1, kind: input, shape index: {}]
  %s2 = inlined_call_operand.vmem [shape: f32[64,1], index: 2, kind: input, shape index: {}]
  %s3 = inlined_call_operand.vmem [shape: f32[64,1], index: 3, kind: output, shape index: {}]
  %s4 = sld [smem:[#allocation0]]
  $region22: #{tpu_custom_call.1} parent=0
    _
  %s6 = ssub.s32 1, %s4
  %s7 = scalar_select 0, %s6, %s4
  // Predicated region
  $region2: #{tpu_custom_call.1} parent=0 // pred_check
    _
  $region3: #{tpu_custom_call.1} parent=0 // pred_check_branch
    %9 = sbr.rel (0) target = $region5
  $region4: #{tpu_custom_call.1} parent=0 // pred_region
    _
  $region5: #{tpu_custom_call.1} parent=0 // pred_fallthru
    _
  // Predicated region
  $region6: #{tpu_custom_call.1} parent=0 // pred_check
    _
  $region7: #{tpu_custom_call.1} parent=0 // pred_check_branch
    %11 = sbr.rel (0) target = $region9
  $region8: #{tpu_custom_call.1} parent=0 // pred_region
    _
  $region9: #{tpu_custom_call.1} parent=0 // pred_fallthru
    _
  // Predicated region
  $region10: #{tpu_custom_call.1} parent=0 // pred_check
    _
  $region11: #{tpu_custom_call.1} parent=0 // pred_check_branch
    %13 = sbr.rel (0) target = $region13
  $region12: #{tpu_custom_call.1} parent=0 // pred_region
    _
  $region13: #{tpu_custom_call.1} parent=0 // pred_fallthru
    _
  %v14 = vld [vmem:[%s0] sm:$0xff]
  %v15 = vld [vmem:[%s0 + $0x8] sm:$0xff]
  %v16 = vld [vmem:[%s0 + $0x10] sm:$0xff]
  %v17 = vld [vmem:[%s0 + $0x18] sm:$0xff]
  %v18 = vld [vmem:[%s0 + $0x20] sm:$0xff]
  %v19 = vld [vmem:[%s0 + $0x28] sm:$0xff]
  %v20 = vld [vmem:[%s0 + $0x30] sm:$0xff]
  %v21 = vld [vmem:[%s0 + $0x38] sm:$0xff]
  %v22 = vld [vmem:[%s1] sm:$0xff]
  %v23 = vld [vmem:[%s1 + $0x8] sm:$0xff]
  %v24 = vld [vmem:[%s1 + $0x10] sm:$0xff]
  %v25 = vld [vmem:[%s1 + $0x18] sm:$0xff]
  %v26 = vld [vmem:[%s1 + $0x20] sm:$0xff]
  %v27 = vld [vmem:[%s1 + $0x28] sm:$0xff]
  %v28 = vld [vmem:[%s1 + $0x30] sm:$0xff]
  %v29 = vld [vmem:[%s1 + $0x38] sm:$0xff]
  %v30 = vld [vmem:[%s2] sm:$0xff]
  %v31 = vld [vmem:[%s2 + $0x8] sm:$0xff]
  %v32 = vld [vmem:[%s2 + $0x10] sm:$0xff]
  %v33 = vld [vmem:[%s2 + $0x18] sm:$0xff]
  %v34 = vld [vmem:[%s2 + $0x20] sm:$0xff]
  %v35 = vld [vmem:[%s2 + $0x28] sm:$0xff]
  %v36 = vld [vmem:[%s2 + $0x30] sm:$0xff]
  %v37 = vld [vmem:[%s2 + $0x38] sm:$0xff]
  %38 = vmax.xlane.f32.xlu0 %v14
  %v39 = vpop.xlane.xlu0 %38
  %40 = vmax.xlane.f32.xlu0 %v15
  %v41 = vpop.xlane.xlu0 %40
  %42 = vmax.xlane.f32.xlu0 %v16
  %v43 = vpop.xlane.xlu0 %42
  %44 = vmax.xlane.f32.xlu0 %v17
  %v45 = vpop.xlane.xlu0 %44
  %46 = vmax.xlane.f32.xlu0 %v18
  %v47 = vpop.xlane.xlu0 %46
  %48 = vmax.xlane.f32.xlu0 %v19
  %v49 = vpop.xlane.xlu0 %48
  %50 = vmax.xlane.f32.xlu0 %v20
  %v51 = vpop.xlane.xlu0 %50
  %52 = vmax.xlane.f32.xlu0 %v21
  %v53 = vpop.xlane.xlu0 %52
  %v54 = vsub.f32 %v14, %v39
  %v55 = vsub.f32 %v15, %v41
  %v56 = vsub.f32 %v16, %v43
  %v57 = vsub.f32 %v17, %v45
  %v58 = vsub.f32 %v18, %v47
  %v59 = vsub.f32 %v19, %v49
  %v60 = vsub.f32 %v20, %v51
  %v61 = vsub.f32 %v21, %v53
  %v62 = vmul.f32 %v54, 1.442695
  %v63 = vpow.pop %v62
  %v64 = vmul.f32 %v55, 1.442695
  %v65 = vpow.pop %v64
  %v66 = vmul.f32 %v56, 1.442695
  %v67 = vpow.pop %v66
  %v68 = vmul.f32 %v57, 1.442695
  %v69 = vpow.pop %v68
  %v70 = vmul.f32 %v58, 1.442695
  %v71 = vpow.pop %v70
  %v72 = vmul.f32 %v59, 1.442695
  %v73 = vpow.pop %v72
  %v74 = vmul.f32 %v60, 1.442695
  %v75 = vpow.pop %v74
  %v76 = vmul.f32 %v61, 1.442695
  %v77 = vpow.pop %v76
  %78 = vadd.xlane.f32.xlu0 %v63
  %v79 = vpop.xlane.xlu0 %78
  %80 = vadd.xlane.f32.xlu0 %v65
  %v81 = vpop.xlane.xlu0 %80
  %82 = vadd.xlane.f32.xlu0 %v67
  %v83 = vpop.xlane.xlu0 %82
  %84 = vadd.xlane.f32.xlu0 %v69
  %v85 = vpop.xlane.xlu0 %84
  %86 = vadd.xlane.f32.xlu0 %v71
  %v87 = vpop.xlane.xlu0 %86
  %88 = vadd.xlane.f32.xlu0 %v73
  %v89 = vpop.xlane.xlu0 %88
  %90 = vadd.xlane.f32.xlu0 %v75
  %v91 = vpop.xlane.xlu0 %90
  %92 = vadd.xlane.f32.xlu0 %v77
  %v93 = vpop.xlane.xlu0 %92
  %v94 = vlog2.pop %v79
  %v95 = vmul.f32 %v94, 0.6931472
  %v96 = vlog2.pop %v81
  %v97 = vmul.f32 %v96, 0.6931472
  %v98 = vlog2.pop %v83
  %v99 = vmul.f32 %v98, 0.6931472
  %v100 = vlog2.pop %v85
  %v101 = vmul.f32 %v100, 0.6931472
  %v102 = vlog2.pop %v87
  %v103 = vmul.f32 %v102, 0.6931472
  %v104 = vlog2.pop %v89
  %v105 = vmul.f32 %v104, 0.6931472
  %v106 = vlog2.pop %v91
  %v107 = vmul.f32 %v106, 0.6931472
  %v108 = vlog2.pop %v93
  %v109 = vmul.f32 %v108, 0.6931472
  %v110 = vadd.f32 %v39, %v95
  %v111 = vadd.f32 %v41, %v97
  %v112 = vadd.f32 %v43, %v99
  %v113 = vadd.f32 %v45, %v101
  %v114 = vadd.f32 %v47, %v103
  %v115 = vadd.f32 %v49, %v105
  %v116 = vadd.f32 %v51, %v107
  %v117 = vadd.f32 %v53, %v109
  %v118 = vlaneseq
  %v119 = vand.u32 %v118, 127
  %120 = vset.pattern.permute.xlu0 0
  %121 = vperm.xlu0 %120, %v22
  %v122 = vpop.permute.xlu0 %121
  %123 = vset.pattern.permute.xlu0 0
  %124 = vperm.xlu0 %123, %v23
  %v125 = vpop.permute.xlu0 %124
  %126 = vset.pattern.permute.xlu0 0
  %127 = vperm.xlu0 %126, %v24
  %v128 = vpop.permute.xlu0 %127
  %129 = vset.pattern.permute.xlu0 0
  %130 = vperm.xlu0 %129, %v25
  %v131 = vpop.permute.xlu0 %130
  %132 = vset.pattern.permute.xlu0 0
  %133 = vperm.xlu0 %132, %v26
  %v134 = vpop.permute.xlu0 %133
  %135 = vset.pattern.permute.xlu0 0
  %136 = vperm.xlu0 %135, %v27
  %v137 = vpop.permute.xlu0 %136
  %138 = vset.pattern.permute.xlu0 0
  %139 = vperm.xlu0 %138, %v28
  %v140 = vpop.permute.xlu0 %139
  %141 = vset.pattern.permute.xlu0 0
  %142 = vperm.xlu0 %141, %v29
  %v143 = vpop.permute.xlu0 %142
  %vm144 = vcmp.eq.s32.totalorder %v119, %v122
  %vm145 = vcmp.eq.s32.totalorder %v119, %v125
  %vm146 = vcmp.eq.s32.totalorder %v119, %v128
  %vm147 = vcmp.eq.s32.totalorder %v119, %v131
  %vm148 = vcmp.eq.s32.totalorder %v119, %v134
  %vm149 = vcmp.eq.s32.totalorder %v119, %v137
  %vm150 = vcmp.eq.s32.totalorder %v119, %v140
  %vm151 = vcmp.eq.s32.totalorder %v119, %v143
  %v152 = vsel %vm144, %v14, 0.0
  %v153 = vsel %vm145, %v15, 0.0
  %v154 = vsel %vm146, %v16, 0.0
  %v155 = vsel %vm147, %v17, 0.0
  %v156 = vsel %vm148, %v18, 0.0
  %v157 = vsel %vm149, %v19, 0.0
  %v158 = vsel %vm150, %v20, 0.0
  %v159 = vsel %vm151, %v21, 0.0
  %160 = vadd.xlane.f32.xlu0 %v152
  %v161 = vpop.xlane.xlu0 %160
  %162 = vadd.xlane.f32.xlu0 %v153
  %v163 = vpop.xlane.xlu0 %162
  %164 = vadd.xlane.f32.xlu0 %v154
  %v165 = vpop.xlane.xlu0 %164
  %166 = vadd.xlane.f32.xlu0 %v155
  %v167 = vpop.xlane.xlu0 %166
  %168 = vadd.xlane.f32.xlu0 %v156
  %v169 = vpop.xlane.xlu0 %168
  %170 = vadd.xlane.f32.xlu0 %v157
  %v171 = vpop.xlane.xlu0 %170
  %172 = vadd.xlane.f32.xlu0 %v158
  %v173 = vpop.xlane.xlu0 %172
  %174 = vadd.xlane.f32.xlu0 %v159
  %v175 = vpop.xlane.xlu0 %174
  %v176 = vsub.f32 %v110, %v161
  %v177 = vsub.f32 %v111, %v163
  %v178 = vsub.f32 %v112, %v165
  %v179 = vsub.f32 %v113, %v167
  %v180 = vsub.f32 %v114, %v169
  %v181 = vsub.f32 %v115, %v171
  %v182 = vsub.f32 %v116, %v173
  %v183 = vsub.f32 %v117, %v175
  %v184 = vmul.f32 %v30, %v176
  %v185 = vmul.f32 %v31, %v177
  %v186 = vmul.f32 %v32, %v178
  %v187 = vmul.f32 %v33, %v179
  %v188 = vmul.f32 %v34, %v180
  %v189 = vmul.f32 %v35, %v181
  %v190 = vmul.f32 %v36, %v182
  %v191 = vmul.f32 %v37, %v183
  %vm192 = vcmask 7168
  %193 = vst.msk [vmem:[%s3] sm:$0xff] %vm192, %v184
  %194 = vst.msk [vmem:[%s3 + $0x8] sm:$0xff] %vm192, %v185
  %195 = vst.msk [vmem:[%s3 + $0x10] sm:$0xff] %vm192, %v186
  %196 = vst.msk [vmem:[%s3 + $0x18] sm:$0xff] %vm192, %v187
  %197 = vst.msk [vmem:[%s3 + $0x20] sm:$0xff] %vm192, %v188
  %198 = vst.msk [vmem:[%s3 + $0x28] sm:$0xff] %vm192, %v189
  %199 = vst.msk [vmem:[%s3 + $0x30] sm:$0xff] %vm192, %v190
  %200 = vst.msk [vmem:[%s3 + $0x38] sm:$0xff] %vm192, %v191
  // Predicated region
  $region14: #{tpu_custom_call.1} parent=0 // pred_check
    _
  $region15: #{tpu_custom_call.1} parent=0 // pred_check_branch
    %202 = sbr.rel (0) target = $region17
  $region16: #{tpu_custom_call.1} parent=0 // pred_region
    _
  $region17: #{tpu_custom_call.1} parent=0 // pred_fallthru
    _
  // Predicated region
  $region18: #{tpu_custom_call.1} parent=0 // pred_check
    _
  $region19: #{tpu_custom_call.1} parent=0 // pred_check_branch
    %204 = sbr.rel (0) target = $region21
  $region20: #{tpu_custom_call.1} parent=0 // pred_region
    _
  $region21: #{tpu_custom_call.1} parent=0 // pred_fallthru
    _

</llo_original>
